<compile_context>
chip_gen: v5e
topology: v5e:2x2
jax: 0.10.0
libtpu: 0.0.40
codegen_flags: <defaults>
</compile_context>

<pallas_src>
import functools

import jax
import jax.numpy as jnp
from jax.experimental import pallas as pl
from jax.experimental.pallas import tpu as pltpu


def _round_up(x, m):
    return ((x + m - 1) // m) * m


def _focal_loss_kernel(x_ref, t_ref, out_ref, acc_ref, *,
                       gamma, alpha, size_average, n, c, tile_n):
    step = pl.program_id(0)
    last = pl.num_programs(0) - 1

    x = x_ref[...].astype(jnp.float32)          # [C, TILE_N] logits
    t = t_ref[...]                              # [1, TILE_N] int32 targets

    # log_softmax along the class axis (sublanes), numerically stable.
    m = jnp.max(x, axis=0, keepdims=True)       # [1, TILE_N]
    z = x - m
    lse = jnp.log(jnp.sum(jnp.exp(z), axis=0, keepdims=True))
    logsm = z - lse                             # [C, TILE_N]

    # gather(1, target) via one-hot mask (no dynamic gather on TPU vregs).
    class_ids = jax.lax.broadcasted_iota(jnp.int32, (c, tile_n), 0)
    onehot = class_ids == t                     # [C, TILE_N] bool
    logpt = jnp.sum(jnp.where(onehot, logsm, jnp.float32(0.0)),
                    axis=0, keepdims=True)      # [1, TILE_N]
    pt = jnp.exp(logpt)                         # [1, TILE_N]

    if alpha is not None:
        # self.alpha = [alpha, 1 - alpha]; at = alpha.gather(0, target)
        at = jnp.where(t == 0, jnp.float32(alpha), jnp.float32(1.0 - alpha))
        logpt = logpt * at

    # Focal modulation with integer-gamma fast path (VPU mults, no pow).
    if gamma == 0:
        loss = jnp.float32(-1.0) * logpt
    else:
        one_m_pt = jnp.float32(1.0) - pt
        g_int = int(gamma)
        if float(g_int) == float(gamma) and g_int >= 1:
            focal = one_m_pt
            for _ in range(g_int - 1):
                focal = focal * one_m_pt
        else:
            focal = one_m_pt ** jnp.float32(gamma)
        loss = jnp.float32(-1.0) * focal * logpt        # [1, TILE_N]

    # Mask out padded columns (global column index >= n).
    col = jax.lax.broadcasted_iota(jnp.int32, (1, tile_n), 1) + step * tile_n
    loss = jnp.where(col < n, loss, jnp.float32(0.0))

    partial = jnp.sum(loss)                     # one cross-lane reduce per tile

    @pl.when(step == 0)
    def _():
        acc_ref[0] = jnp.float32(0.0)

    acc_ref[0] += partial

    @pl.when(step == last)
    def _():
        total = acc_ref[0]
        if size_average:
            total = total / jnp.float32(n)
        out_ref[0, 0] = total


def focal_loss_1d(logits, target, *, gamma=0.0, alpha=None, size_average=True,
                  tile_n=8192):
    """Pallas implementation of FocalLoss1d.forward.

    logits: [N, C] float array (f32 or bf16; cast to f32 happens in-kernel)
    target: [N] or [N, 1] int array of class indices
    returns: scalar float32 loss
    """
    n, c = logits.shape

    # Lane-dense layout: [C, N] logits, [1, N] targets (layout plumbing only).
    x_t = jnp.transpose(logits)                                  # [C, N]
    t_row = jnp.asarray(target, jnp.int32).reshape(1, n)         # [1, N]

    # Tile sizing: multiple of 128 lanes, capped by (padded) N.
    tile = min(int(tile_n), _round_up(n, 128))
    tile = _round_up(tile, 128)
    n_pad = _round_up(n, tile)
    if n_pad != n:
        x_t = jnp.pad(x_t, ((0, 0), (0, n_pad - n)))
        t_row = jnp.pad(t_row, ((0, 0), (0, n_pad - n)))
    num_tiles = n_pad // tile

    kernel = functools.partial(
        _focal_loss_kernel,
        gamma=gamma,
        alpha=alpha,
        size_average=size_average,
        n=n,
        c=c,
        tile_n=tile,
    )

    out = pl.pallas_call(
        kernel,
        out_shape=jax.ShapeDtypeStruct((1, 1), jnp.float32),
        grid=(num_tiles,),
        in_specs=[
            pl.BlockSpec((c, tile), lambda i: (0, i)),
            pl.BlockSpec((1, tile), lambda i: (0, i)),
        ],
        out_specs=pl.BlockSpec((1, 1), lambda i: (0, 0),
                               memory_space=pltpu.MemorySpace.SMEM),
        scratch_shapes=[pltpu.SMEM((1,), jnp.float32)],
        compiler_params=pltpu.CompilerParams(
            dimension_semantics=("arbitrary",)),
    )(x_t, t_row)
    # TODO(synk): on v7x the N-tile axis could be split across the 2 TensorCores
    # (core-parallel partials reduced in the wrapper); kept single-core here.
    return out[0, 0]


def focal_loss_1d_ref(logits, target, *, gamma=0.0, alpha=None, size_average=True):
    """Pure-JAX reference mirroring the PyTorch module."""
    n, c = logits.shape
    target = jnp.asarray(target, jnp.int32).reshape(n)
    logsm = jax.nn.log_softmax(logits.astype(jnp.float32), axis=1)
    logpt = jnp.take_along_axis(logsm, target[:, None], axis=1)[:, 0]
    pt = jnp.exp(logpt)
    if alpha is not None:
        alpha_vec = jnp.array([alpha, 1.0 - alpha], jnp.float32)
        logpt = logpt * alpha_vec[target]
    loss = -1.0 * (1.0 - pt) ** gamma * logpt
    return loss.mean() if size_average else loss.sum()


if __name__ == "__main__":
    key = jax.random.PRNGKey(0)
    k1, k2, k3, k4, k5, k6 = jax.random.split(key, 6)

    # Case 1: gamma=2, no alpha, 8 classes, mean reduction.
    n1, c1 = 16, 8
    x1 = jax.random.normal(k1, (n1, c1), jnp.float32)
    t1 = jax.random.randint(k2, (n1,), 0, c1, jnp.int32)
    out1 = jax.block_until_ready(
        focal_loss_1d(x1, t1, gamma=2.0, alpha=None, size_average=True))
    ref1 = focal_loss_1d_ref(x1, t1, gamma=2.0, alpha=None, size_average=True)
    assert jnp.allclose(out1, ref1, atol=1e-5, rtol=1e-5), (out1, ref1)

    # Case 2: gamma=2, alpha=0.25, binary classes, sum reduction.
    n2, c2 = 16, 2
    x2 = jax.random.normal(k3, (n2, c2), jnp.float32)
    t2 = jax.random.randint(k4, (n2,), 0, c2, jnp.int32)
    out2 = jax.block_until_ready(
        focal_loss_1d(x2, t2, gamma=2.0, alpha=0.25, size_average=False))
    ref2 = focal_loss_1d_ref(x2, t2, gamma=2.0, alpha=0.25, size_average=False)
    assert jnp.allclose(out2, ref2, atol=1e-5, rtol=1e-5), (out2, ref2)

    # Case 3: non-multiple-of-tile N (exercises padding/masking + grid > 1),
    # non-integer gamma path, bf16 inputs.
    n3, c3 = 300, 4
    x3 = jax.random.normal(k5, (n3, c3), jnp.float32).astype(jnp.bfloat16)
    t3 = jax.random.randint(k6, (n3,), 0, c3, jnp.int32)
    out3 = jax.block_until_ready(
        focal_loss_1d(x3, t3, gamma=1.5, alpha=None, size_average=True,
                      tile_n=128))
    ref3 = focal_loss_1d_ref(x3.astype(jnp.float32), t3, gamma=1.5, alpha=None,
                             size_average=True)
    assert jnp.allclose(out3, ref3, atol=2e-3, rtol=2e-3), (out3, ref3)

    print("KERNEL_OK")
</pallas_src>

<mosaic_0001>
module attributes {stable_mosaic.version = 11 : i64} {
  func.func @_focal_loss_kernel(%arg0: i32, %arg1: memref<8x128xf32, #tpu.memory_space<vmem>>, %arg2: memref<1x128xi32, #tpu.memory_space<vmem>>, %arg3: memref<1x1xf32, #tpu.memory_space<smem>>, %arg4: memref<1xf32, #tpu.memory_space<smem>>) attributes {dimension_semantics = [#tpu.dimension_semantics<arbitrary>], iteration_bounds = array<i64: 1>, scalar_prefetch = 0 : i64, scratch_operands = 1 : i64, tpu.core_type = #tpu.core_type<tc>, window_params = [{transform_indices = @transform_0, window_bounds = array<i64: 8, 128>}, {transform_indices = @transform_1, window_bounds = array<i64: 1, 128>}, {transform_indices = @transform_2, window_bounds = array<i64: 1, 1>}]} {
    %c0 = arith.constant 0 : index
    %c0_0 = arith.constant 0 : index
    %0 = vector.load %arg1[%c0, %c0_0] : memref<8x128xf32, #tpu.memory_space<vmem>>, vector<8x128xf32>
    %c0_1 = arith.constant 0 : index
    %c0_2 = arith.constant 0 : index
    %1 = vector.load %arg2[%c0_1, %c0_2] : memref<1x128xi32, #tpu.memory_space<vmem>>, vector<1x128xi32>
    %cst = arith.constant dense<0xFF800000> : vector<128xf32>
    %2 = vector.multi_reduction <maximumf>, %0, %cst [0] : vector<8x128xf32> to vector<128xf32>
    %3 = vector.shape_cast %2 : vector<128xf32> to vector<1x128xf32>
    %4 = vector.broadcast %3 : vector<1x128xf32> to vector<8x128xf32>
    %5 = arith.subf %0, %4 : vector<8x128xf32>
    %6 = math.exp %5 : vector<8x128xf32>
    %cst_3 = arith.constant dense<0.000000e+00> : vector<128xf32>
    %7 = vector.multi_reduction <add>, %6, %cst_3 [0] : vector<8x128xf32> to vector<128xf32>
    %8 = vector.shape_cast %7 : vector<128xf32> to vector<1x128xf32>
    %9 = math.log %8 : vector<1x128xf32>
    %10 = vector.broadcast %9 : vector<1x128xf32> to vector<8x128xf32>
    %11 = arith.subf %5, %10 : vector<8x128xf32>
    %12 = tpu.iota {dimensions = array<i32: 0>} : vector<8x128xi32>
    %13 = vector.broadcast %1 : vector<1x128xi32> to vector<8x128xi32>
    %14 = arith.cmpi eq, %12, %13 : vector<8x128xi32>
    %cst_4 = arith.constant 0.000000e+00 : f32
    %15 = vector.broadcast %cst_4 : f32 to vector<8x128xf32>
    %16 = arith.select %14, %11, %15 : vector<8x128xi1>, vector<8x128xf32>
    %cst_5 = arith.constant dense<0.000000e+00> : vector<128xf32>
    %17 = vector.multi_reduction <add>, %16, %cst_5 [0] : vector<8x128xf32> to vector<128xf32>
    %18 = vector.shape_cast %17 : vector<128xf32> to vector<1x128xf32>
    %19 = math.exp %18 : vector<1x128xf32>
    %cst_6 = arith.constant 1.000000e+00 : f32
    %20 = vector.broadcast %cst_6 : f32 to vector<1x128xf32>
    %21 = arith.subf %20, %19 : vector<1x128xf32>
    %22 = arith.mulf %21, %21 : vector<1x128xf32>
    %cst_7 = arith.constant -1.000000e+00 : f32
    %23 = vector.broadcast %cst_7 : f32 to vector<1x128xf32>
    %24 = arith.mulf %23, %22 : vector<1x128xf32>
    %25 = arith.mulf %24, %18 : vector<1x128xf32>
    %26 = tpu.iota {dimensions = array<i32: 1>} : vector<1x128xi32>
    %c128_i32 = arith.constant 128 : i32
    %27 = arith.muli %arg0, %c128_i32 : i32
    %28 = vector.broadcast %27 : i32 to vector<1x128xi32>
    %29 = arith.addi %26, %28 : vector<1x128xi32>
    %c16_i32 = arith.constant 16 : i32
    %30 = vector.broadcast %c16_i32 : i32 to vector<1x128xi32>
    %31 = arith.cmpi slt, %29, %30 : vector<1x128xi32>
    %cst_8 = arith.constant 0.000000e+00 : f32
    %32 = vector.broadcast %cst_8 : f32 to vector<1x128xf32>
    %33 = arith.select %31, %25, %32 : vector<1x128xi1>, vector<1x128xf32>
    %34 = vector.shape_cast %33 : vector<1x128xf32> to vector<1x1x128xf32>
    %cst_9 = arith.constant dense<0.000000e+00> : vector<1xf32>
    %35 = vector.multi_reduction <add>, %34, %cst_9 [1, 2] : vector<1x1x128xf32> to vector<1xf32>
    %36 = vector.shape_cast %35 : vector<1xf32> to vector<1x1x1xf32>
    %37 = vector.extract %36[0, 0, 0] : f32 from vector<1x1x1xf32>
    %c0_i32 = arith.constant 0 : i32
    %38 = arith.cmpi eq, %arg0, %c0_i32 : i32
    %39 = arith.extui %38 : i1 to i32
    %c0_i32_10 = arith.constant 0 : i32
    %40 = arith.cmpi ne, %39, %c0_i32_10 : i32
    scf.if %40 {
      %cst_15 = arith.constant 0.000000e+00 : f32
      %c0_16 = arith.constant 0 : index
      %47 = memref.load %arg4[%c0_16] : memref<1xf32, #tpu.memory_space<smem>>
      memref.store %cst_15, %arg4[%c0_16] : memref<1xf32, #tpu.memory_space<smem>>
    } else {
    }
    %c0_11 = arith.constant 0 : index
    %41 = memref.load %arg4[%c0_11] : memref<1xf32, #tpu.memory_space<smem>>
    %42 = arith.addf %41, %37 : f32
    %c0_12 = arith.constant 0 : index
    %43 = memref.load %arg4[%c0_12] : memref<1xf32, #tpu.memory_space<smem>>
    memref.store %42, %arg4[%c0_12] : memref<1xf32, #tpu.memory_space<smem>>
    %c0_i32_13 = arith.constant 0 : i32
    %44 = arith.cmpi eq, %arg0, %c0_i32_13 : i32
    %45 = arith.extui %44 : i1 to i32
    %c0_i32_14 = arith.constant 0 : i32
    %46 = arith.cmpi ne, %45, %c0_i32_14 : i32
    scf.if %46 {
      %c0_15 = arith.constant 0 : index
      %47 = memref.load %arg4[%c0_15] : memref<1xf32, #tpu.memory_space<smem>>
      %cst_16 = arith.constant 1.600000e+01 : f32
      %48 = arith.divf %47, %cst_16 : f32
      %c0_17 = arith.constant 0 : index
      %c0_18 = arith.constant 0 : index
      %49 = memref.load %arg3[%c0_17, %c0_18] : memref<1x1xf32, #tpu.memory_space<smem>>
      memref.store %48, %arg3[%c0_17, %c0_18] : memref<1x1xf32, #tpu.memory_space<smem>>
    } else {
    }
    return
  }
  func.func @transform_0(%arg0: i32) -> (i32, i32) {
    %c0_i32 = arith.constant 0 : i32
    %c0_i32_0 = arith.constant 0 : i32
    return %c0_i32, %arg0 : i32, i32
  }
  func.func @transform_1(%arg0: i32) -> (i32, i32) {
    %c0_i32 = arith.constant 0 : i32
    %c0_i32_0 = arith.constant 0 : i32
    return %c0_i32, %arg0 : i32, i32
  }
  func.func @transform_2(%arg0: i32) -> (i32, i32) {
    %c0_i32 = arith.constant 0 : i32
    %c0_i32_0 = arith.constant 0 : i32
    %c0_i32_1 = arith.constant 0 : i32
    return %c0_i32, %c0_i32_0 : i32, i32
  }
}

</mosaic_0001>

<llo_original>
// kernel: tpu_custom_call.1
$region0: #{tpu_custom_call.1}
  #allocation0 [shape = 'u32[]', space=smem, size = 0x4, offset = 0x4, fixed_abs, tag = 'smem constant byte address 0x4 - core index']
  #allocation1 [shape = 'u32[72,128]{1,0:T(1,128)}', space=vmem, size = 0x9000, scoped, tag = 'internal scratch']
  #allocation2 [shape = 'f32[1]{0:T(128)}', space=smem, size = 0x200, scoped, tag = 'scratch operand']
  %s0 = inlined_call_operand.hbm [shape: f32[8,128], index: 0, kind: input, shape index: {}]
  %s1 = inlined_call_operand.hbm [shape: s32[1,128], index: 1, kind: input, shape index: {}]
  %s2 = inlined_call_operand.hbm [shape: f32[1,1], index: 2, kind: output, shape index: {}]
  %s3 = sld [smem:[#allocation0]]
  $region34: #{tpu_custom_call.1} parent=0
    _
  %s5 = ssub.s32 1, %s3
  %s6 = scalar_select 0, %s5, %s3
  $region1: #{tpu_custom_call.1} parent=0
    #allocation3 [shape = 'u8[4096]{0}', space=vmem, size = 0x1000, scoped, tag = 'input window, operand 0, single buffered']
    #allocation4 [shape = 's32[1]{0}', space=sflag, size = 0x4, scoped, tag = 'scoped memory for tpu_custom_call.1']
    #allocation5 [shape = 's32[1]{0}', space=sflag, size = 0x4, scoped, tag = 'scoped memory for tpu_custom_call.1']
    #allocation6 [shape = 'u8[512]{0}', space=vmem, size = 0x400, scoped, tag = 'input window, operand 1, single buffered']
    #allocation7 [shape = 's32[1]{0}', space=sflag, size = 0x4, scoped, tag = 'scoped memory for tpu_custom_call.1']
    #allocation8 [shape = 'u8[512]{0}', space=smem, size = 0x200, scoped, tag = 'output window, operand 0, single buffered']
    %7 = vsyncpa [#allocation4], 0
    %8 = vsyncpa [#allocation7], 0
    %9 = vsyncpa [#allocation5], 0
    // Predicated region
    $region2: #{tpu_custom_call.1} parent=1 // pred_check
      _
    $region3: #{tpu_custom_call.1} parent=1 // pred_check_branch
      %11 = sbr.rel (0) target = $region5
    $region4: #{tpu_custom_call.1} parent=1 // pred_region
      %13 = vsyncadd [#allocation4], 0
      %s15 = sshll.u32 %s0, 4
      %s16 = int_to_ptr.hbm [resolvable:$true] %s15
      %s17 = sshll.u32 [#allocation3], 4
      %s18 = int_to_ptr.vmem [resolvable:$true] %s17
      %20 = dma.hbm_to_vmem [thread:$0]  %s16, 128, %s18, [#allocation4]
    $region5: #{tpu_custom_call.1} parent=1 // pred_fallthru
      _
    // Predicated region
    $region6: #{tpu_custom_call.1} parent=1 // pred_check
      _
    $region7: #{tpu_custom_call.1} parent=1 // pred_check_branch
      %22 = sbr.rel (0) target = $region9
    $region8: #{tpu_custom_call.1} parent=1 // pred_region
      %24 = vsyncadd [#allocation7], 0
      %s26 = sshll.u32 %s1, 4
      %s27 = int_to_ptr.hbm [resolvable:$true] %s26
      %s28 = sshll.u32 [#allocation6], 4
      %s29 = int_to_ptr.vmem [resolvable:$true] %s28
      %31 = dma.hbm_to_vmem [thread:$0]  %s27, 16, %s29, [#allocation7]
    $region9: #{tpu_custom_call.1} parent=1 // pred_fallthru
      _
    // Predicated region
    $region10: #{tpu_custom_call.1} parent=1 // pred_check
      _
    $region11: #{tpu_custom_call.1} parent=1 // pred_check_branch
      %33 = sbr.rel (0) target = $region13
    $region12: #{tpu_custom_call.1} parent=1 // pred_region
      %35 = dma.done [#allocation4], 128
    $region13: #{tpu_custom_call.1} parent=1 // pred_fallthru
      _
    // Predicated region
    $region14: #{tpu_custom_call.1} parent=1 // pred_check
      _
    $region15: #{tpu_custom_call.1} parent=1 // pred_check_branch
      %37 = sbr.rel (0) target = $region17
    $region16: #{tpu_custom_call.1} parent=1 // pred_region
      %39 = dma.done [#allocation7], 16
    $region17: #{tpu_custom_call.1} parent=1 // pred_fallthru
      _
    %v40 = vld [vmem:[#allocation3] sm:$0xff]
    %v41 = vld [vmem:[#allocation6] sm:$0x1]
    %v42 = vrot.slane %v40, 4
    %v43 = vmax.f32 %v40, %v42
    %v44 = vrot.slane %v43, 2
    %v45 = vmax.f32 %v43, %v44
    %v46 = vrot.slane %v45, 1
    %v47 = vmax.f32 %v45, %v46
    %v48 = vsub.f32 %v40, %v47
    %v49 = vmul.f32 %v48, 1.442695
    %v50 = vpow.pop %v49
    %v51 = vrot.slane %v50, 4
    %v52 = vadd.f32 %v50, %v51
    %v53 = vrot.slane %v52, 2
    %v54 = vadd.f32 %v52, %v53
    %v55 = vrot.slane %v54, 1
    %v56 = vadd.f32 %v54, %v55
    %v57 = vlog2.pop %v56
    %v58 = vmul.f32 %v57, 0.6931472
    %v59 = vsub.f32 %v48, %v58
    %v60 = vlaneseq
    %v61 = vshrl.u32 %v60, 7
    %v62 = vperm.slane %v41, 0
    %vm63 = vcmp.eq.s32.totalorder %v61, %v62
    %v64 = vsel %vm63, %v59, 0.0
    %v65 = vrot.slane %v64, 4
    %v66 = vadd.f32 %v64, %v65
    %v67 = vrot.slane %v66, 2
    %v68 = vadd.f32 %v66, %v67
    %v69 = vrot.slane %v68, 1
    %v70 = vadd.f32 %v68, %v69
    %v71 = vmul.f32 %v70, 1.442695
    %v72 = vpow.pop %v71
    %v73 = vsub.f32 1.0, %v72
    %v74 = vmul.f32 %v73, %v73
    %v75 = vmul.f32 %v74, -1.0
    %v76 = vmul.f32 %v75, %v70
    %v77 = vlaneseq
    %v78 = vand.u32 %v77, 127
    %s79 = smul.u32 0, 128
    %v80 = vstv %s79
    %v81 = vadd.s32 %v78, %v80
    %vm82 = vcmp.lt.s32.totalorder %v81, 16
    %v83 = vsel %vm82, %v76, 0.0
    %vm84 = vcmask 1040384
    %v85 = vsel %vm84, %v83, 0.0
    %86 = vadd.xlane.f32.xlu0 %v85
    %v87 = vpop.xlane.xlu0 %86
    %v88 = vrot.slane %v87, 4
    %v89 = vadd.f32 %v87, %v88
    %v90 = vrot.slane %v89, 2
    %v91 = vadd.f32 %v89, %v90
    %v92 = vrot.slane %v91, 1
    %v93 = vadd.f32 %v91, %v92
    %s94 = vtos %v93
    %p95 = scmp.eq.s32.totalorder 0, 0
    // Predicated region
    $region18: #{tpu_custom_call.1} parent=1 // pred_check
      %p96 = pneg %p95
    $region19: #{tpu_custom_call.1} parent=1 // pred_check_branch
      %98 = sbr.rel (%p96) target = $region21
    $region20: #{tpu_custom_call.1} parent=1 // pred_region
      %s99 = scalar_lea.smem [#allocation2], 0
      %100 = sst [smem:[%s99]] 0.0
    $region21: #{tpu_custom_call.1} parent=1 // pred_fallthru
      _
    %s101 = sld [smem:[#allocation2]]
    %s102 = sadd.f32 %s101, %s94
    %s103 = scalar_lea.smem [#allocation2], 0
    %104 = sst [smem:[%s103]] %s102
    // Predicated region
    $region22: #{tpu_custom_call.1} parent=1 // pred_check
      %p105 = pneg %p95
    $region23: #{tpu_custom_call.1} parent=1 // pred_check_branch
      %107 = sbr.rel (%p105) target = $region25
    $region24: #{tpu_custom_call.1} parent=1 // pred_region
      %s108 = sld [smem:[#allocation2]]
      %v109 = vrcp.pop 16.0
      %v110 = vmul.f32 16.0, %v109
      %v111 = vsub.f32 1.0, %v110
      %v112 = vmul.f32 %v109, %v111
      %v113 = vadd.f32 %v109, %v112
      %vm114 = vweird.f32 %v109
      %v115 = vsel %vm114, %v109, %v113
      %s116 = vtos %v115
      %s117 = smul.f32 %s108, %s116
      %s118 = scalar_lea.smem [#allocation8], 0
      %119 = sst [smem:[%s118]] %s117
    $region25: #{tpu_custom_call.1} parent=1 // pred_fallthru
      _
    // Predicated region
    $region26: #{tpu_custom_call.1} parent=1 // pred_check
      _
    $region27: #{tpu_custom_call.1} parent=1 // pred_check_branch
      %121 = sbr.rel (0) target = $region29
    $region28: #{tpu_custom_call.1} parent=1 // pred_region
      %123 = vsyncadd [#allocation5], 0
      %s125 = sshll.u32 %s2, 4
      %s126 = int_to_ptr.hbm [resolvable:$true] %s125
      %128 = dma.smem_to_hbm [#allocation8], 16, %s126, [#allocation5]
    $region29: #{tpu_custom_call.1} parent=1 // pred_fallthru
      _
    // Predicated region
    $region30: #{tpu_custom_call.1} parent=1 // pred_check
      _
    $region31: #{tpu_custom_call.1} parent=1 // pred_check_branch
      %130 = sbr.rel (0) target = $region33
    $region32: #{tpu_custom_call.1} parent=1 // pred_region
      %132 = dma.done [#allocation5], 16
    $region33: #{tpu_custom_call.1} parent=1 // pred_fallthru
      _
    %133 = sfence
    %134 = vsyncpa [#allocation4], 1
    %135 = vsyncpa [#allocation7], 1
    %136 = vsyncpa [#allocation5], 1

</llo_original>
